<compile_context>
chip_gen: v5e
topology: v5e:2x2
jax: 0.10.0
libtpu: 0.0.40
codegen_flags: <defaults>
</compile_context>

<pallas_src>
import math
import functools

import jax
import jax.numpy as jnp
from jax.experimental import pallas as pl
from jax.experimental.pallas import tpu as pltpu


# ----------------------------------------------------------------------------
# Hardware-flavor helpers
# ----------------------------------------------------------------------------

def _tpu_flavor():
    """Best-effort TPU generation detection (defaults are safe for any chip)."""
    try:
        kind = jax.devices()[0].device_kind.lower()
    except Exception:
        kind = ""
    is_v7 = ("v7" in kind) or ("7x" in kind)
    is_v6 = ("v6" in kind) and not is_v7
    return is_v7, is_v6


def _pick_tile(S, preferred):
    """Largest of (preferred, 256, 128) that divides S; else the full axis."""
    for t in (preferred, 256, 128):
        if t <= S and S % t == 0:
            return t
    return S


def _vmem_limit(est_bytes, is_v7):
    """Scoped-VMEM budget: 2x the estimate, floored at 32 MiB, capped per gen."""
    cap = (56 if is_v7 else 100) * 1024 * 1024   # ~56 MiB ceiling on v7x (64 MiB phys)
    return int(min(max(2 * est_bytes, 32 * 1024 * 1024), cap))


def _flash_vmem_estimate(tq, tk, D, H, d_k, has_mask):
    blk = tq * D * 2 + 2 * (tk * D * 2) + tq * D * 2      # Q, K, V, out blocks (bf16)
    if has_mask:
        blk += tq * tk * 2                                  # bf16 additive bias tile
    blk *= 2                                                # double-buffered pipeline
    scratch = 2 * H * tq * 4 + H * tq * d_k * 4             # m, l, acc (f32)
    temps = 2 * H * tq * tk * 4                              # live s / p temporaries
    return blk + scratch + temps


def _proj_vmem_estimate(ts, D, H, d_k):
    blk = 2 * (ts * D * 4 + H * ts * d_k * 2)               # x (f32) + out (bf16), 2-buf
    weights = D * D * 2 + D * 4                              # single-buffered W (bf16) + b
    return blk + weights + ts * D * 4                        # plus f32 y temporary


def _const_spec(shape, index_map):
    """Constant (weight/bias) block: single-buffer it — only one resident copy."""
    try:
        return pl.BlockSpec(shape, index_map, pipeline_mode=pl.Buffered(1))
    except Exception:                                        # older BlockSpec signature
        return pl.BlockSpec(shape, index_map)


# ----------------------------------------------------------------------------
# Pass 1: input projection + head split   (B, S, D) -> (B, H, S, d_k) bf16
# ----------------------------------------------------------------------------

def _linear_heads_kernel(x_ref, w_ref, b_ref, o_ref, *, n_head, d_k, scale):
    ts = x_ref.shape[1]
    x = x_ref[0].astype(jnp.bfloat16)
    y = jnp.dot(x, w_ref[...], preferred_element_type=jnp.float32) + b_ref[...]
    if scale != 1.0:
        y = y * jnp.float32(scale)
    yh = jnp.transpose(y.reshape(ts, n_head, d_k), (1, 0, 2))
    o_ref[0] = yh.astype(jnp.bfloat16)


def _project_heads(x, w_t, b, n_head, d_k, scale, ts, vmem_limit):
    B, S, D = x.shape
    kernel = functools.partial(_linear_heads_kernel, n_head=n_head, d_k=d_k, scale=scale)
    return pl.pallas_call(
        kernel,
        out_shape=jax.ShapeDtypeStruct((B, n_head, S, d_k), jnp.bfloat16),
        grid=(B, S // ts),
        in_specs=[
            pl.BlockSpec((1, ts, D), lambda b_, si: (b_, si, 0)),
            _const_spec((D, D), lambda b_, si: (0, 0)),
            _const_spec((1, D), lambda b_, si: (0, 0)),
        ],
        out_specs=pl.BlockSpec((1, n_head, ts, d_k), lambda b_, si: (b_, 0, si, 0)),
        compiler_params=pltpu.CompilerParams(
            dimension_semantics=("parallel", "parallel"),
            vmem_limit_bytes=vmem_limit,
        ),
    )(x, w_t, b)


# ----------------------------------------------------------------------------
# Pass 2: flash attention over pre-projected, head-split Q/K/V
# ----------------------------------------------------------------------------

def _flash_attn_kernel(act_ref, *args, n_head, d_k, exp_dtype, has_mask):
    if has_mask:
        bias_ref, q_ref, k_ref, v_ref, out_ref, m_ref, l_ref, acc_ref = args
    else:
        q_ref, k_ref, v_ref, out_ref, m_ref, l_ref, acc_ref = args
        bias_ref = None

    ki = pl.program_id(2)
    tq = q_ref.shape[2]

    @pl.when(ki == 0)
    def _init():
        m_ref[...] = jnp.full(m_ref.shape, -jnp.inf, jnp.float32)
        l_ref[...] = jnp.zeros(l_ref.shape, jnp.float32)
        acc_ref[...] = jnp.zeros(acc_ref.shape, jnp.float32)

    def _update():
        Qh = q_ref[0]                     # (H, tq, d_k) bf16, pre-scaled by 1/sqrt(d_k)
        Kh = k_ref[0]                     # (H, tk, d_k) bf16
        Vh = v_ref[0]                     # (H, tk, d_k) bf16
        # Scores: one head-batched MXU matmul, f32 accumulation.
        s = jnp.einsum('hqd,hkd->hqk', Qh, Kh, preferred_element_type=jnp.float32)
        if has_mask:
            s = s + bias_ref[...][None, :, :]      # bf16 additive bias, promotes to f32
        # Online softmax (state in f32; exp in bf16 on v6e/v7x, f32 on v5e).
        m_prev = m_ref[...]
        m_new = jnp.maximum(m_prev, s.max(axis=-1, keepdims=True))
        alpha = jnp.exp(m_prev - m_new)
        p = jnp.exp((s - m_new).astype(exp_dtype))
        l_ref[...] = alpha * l_ref[...] + jnp.sum(
            p.astype(jnp.float32), axis=-1, keepdims=True)
        acc_ref[...] = alpha * acc_ref[...] + jnp.einsum(
            'hqk,hkd->hqd', p.astype(jnp.bfloat16), Vh,
            preferred_element_type=jnp.float32)
        m_ref[...] = m_new

    if has_mask:
        # Skip kv tiles that are entirely masked (prefetched per-tile flags).
        nk = pl.num_programs(2)
        tile_active = act_ref[pl.program_id(1) * nk + ki] != 0
        pl.when(tile_active)(_update)
    else:
        _update()

    @pl.when(ki == pl.num_programs(2) - 1)
    def _finalize():
        l = l_ref[...]
        # Guard rows whose every tile was skipped (fully masked row -> output 0;
        # the f32 reference produces NaN for such rows).
        l = jnp.where(l == 0.0, jnp.float32(1.0), l)
        attn = acc_ref[...] * pl.reciprocal(l, approx=True)
        out_ref[0] = jnp.transpose(attn, (1, 0, 2)).reshape(
            tq, n_head * d_k).astype(out_ref.dtype)


def _flash_attention(qh, kh, vh, bias, active, tq, tk, exp_dtype, vmem_limit):
    B, H, S, d_k = qh.shape
    D = H * d_k
    has_mask = bias is not None

    q_spec = pl.BlockSpec((1, H, tq, d_k), lambda b, qi, ki, act: (b, 0, qi, 0))
    k_spec = pl.BlockSpec((1, H, tk, d_k), lambda b, qi, ki, act: (b, 0, ki, 0))
    v_spec = pl.BlockSpec((1, H, tk, d_k), lambda b, qi, ki, act: (b, 0, ki, 0))
    out_spec = pl.BlockSpec((1, tq, D), lambda b, qi, ki, act: (b, qi, 0))

    in_specs, inputs = [], []
    if has_mask:
        in_specs.append(pl.BlockSpec((tq, tk), lambda b, qi, ki, act: (qi, ki)))
        inputs.append(bias)
    in_specs += [q_spec, k_spec, v_spec]
    inputs += [qh, kh, vh]

    kernel = functools.partial(_flash_attn_kernel, n_head=H, d_k=d_k,
                               exp_dtype=exp_dtype, has_mask=has_mask)
    return pl.pallas_call(
        kernel,
        out_shape=jax.ShapeDtypeStruct((B, S, D), jnp.bfloat16),
        grid_spec=pltpu.PrefetchScalarGridSpec(
            num_scalar_prefetch=1,
            grid=(B, S // tq, S // tk),
            in_specs=in_specs,
            out_specs=out_spec,
            scratch_shapes=[
                pltpu.VMEM((H, tq, 1), jnp.float32),     # running max m
                pltpu.VMEM((H, tq, 1), jnp.float32),     # running sum l
                pltpu.VMEM((H, tq, d_k), jnp.float32),   # output accumulator
            ],
        ),
        compiler_params=pltpu.CompilerParams(
            dimension_semantics=("parallel", "parallel", "arbitrary"),
            vmem_limit_bytes=vmem_limit,
        ),
    )(active, *inputs)


# ----------------------------------------------------------------------------
# Pass 3: output projection  (B, S, D) bf16 -> (B, S, D) out_dtype
# ----------------------------------------------------------------------------

def _linear_out_kernel(x_ref, w_ref, b_ref, o_ref):
    y = jnp.dot(x_ref[0], w_ref[...], preferred_element_type=jnp.float32) + b_ref[...]
    o_ref[0] = y.astype(o_ref.dtype)


def _output_projection(x, w_t, b, out_dtype, ts, vmem_limit):
    B, S, D = x.shape
    return pl.pallas_call(
        _linear_out_kernel,
        out_shape=jax.ShapeDtypeStruct((B, S, D), out_dtype),
        grid=(B, S // ts),
        in_specs=[
            pl.BlockSpec((1, ts, D), lambda b_, si: (b_, si, 0)),
            _const_spec((D, D), lambda b_, si: (0, 0)),
            _const_spec((1, D), lambda b_, si: (0, 0)),
        ],
        out_specs=pl.BlockSpec((1, ts, D), lambda b_, si: (b_, si, 0)),
        compiler_params=pltpu.CompilerParams(
            dimension_semantics=("parallel", "parallel"),
            vmem_limit_bytes=vmem_limit,
        ),
    )(x, w_t, b)


# ----------------------------------------------------------------------------
# Full module forward
# ----------------------------------------------------------------------------

def multi_head_attention(q, k, v, params, n_head, mask=None, *, tq=None, tk=None):
    """q, k, v: (B, S, D) float32.  params: dict of nn.Linear weights/biases."""
    B, S, D = q.shape
    assert D % n_head == 0
    d_k = D // n_head

    is_v7, is_v6 = _tpu_flavor()
    newer_mxu = is_v6 or is_v7                       # 256x256 MXU, bf16 EUP/VPU
    preferred_tile = 256 if newer_mxu else 128       # v5e: 128x128 MXU -> 128 tiles
    if tq is None:
        tq = _pick_tile(S, preferred_tile)
    if tk is None:
        tk = _pick_tile(S, preferred_tile)
    assert S % tq == 0 and S % tk == 0
    exp_dtype = jnp.bfloat16 if newer_mxu else jnp.float32

    # nn.Linear weights are (out, in): pre-transpose to (in, out), cast to bf16
    # (MXU-native, halves weight DMA/residency).  Biases stay f32.
    to_bf16_t = lambda w: w.T.astype(jnp.bfloat16)
    wq_t, wk_t, wv_t, wo_t = (to_bf16_t(params[n]) for n in ("wq", "wk", "wv", "wo"))
    bq, bk, bv, bo = (params[n].reshape(1, D).astype(jnp.float32)
                      for n in ("bq", "bk", "bv", "bo"))

    # --- Pass 1: projections + head split (Q pre-scaled by 1/sqrt(d_k)) -----
    proj_ts = _pick_tile(S, 256)
    proj_vmem = _vmem_limit(_proj_vmem_estimate(proj_ts, D, n_head, d_k), is_v7)
    qh = _project_heads(q, wq_t, bq, n_head, d_k, 1.0 / math.sqrt(d_k), proj_ts, proj_vmem)
    kh = _project_heads(k, wk_t, bk, n_head, d_k, 1.0, proj_ts, proj_vmem)
    vh = _project_heads(v, wv_t, bv, n_head, d_k, 1.0, proj_ts, proj_vmem)

    # --- Mask -> bf16 additive bias + per-tile "any unmasked" skip flags ----
    nq, nk = S // tq, S // tk
    if mask is not None:
        mask_i = mask.astype(jnp.int32)
        bias = jnp.where(mask_i != 0, jnp.float32(-1e30),
                         jnp.float32(0.0)).astype(jnp.bfloat16)
        active = jnp.any(mask_i.reshape(nq, tq, nk, tk) == 0,
                         axis=(1, 3)).astype(jnp.int32).reshape(-1)
    else:
        bias = None
        active = jnp.ones((nq * nk,), jnp.int32)

    # --- Pass 2: flash attention --------------------------------------------
    flash_vmem = _vmem_limit(
        _flash_vmem_estimate(tq, tk, D, n_head, d_k, bias is not None), is_v7)
    attn = _flash_attention(qh, kh, vh, bias, active, tq, tk, exp_dtype, flash_vmem)

    # --- Pass 3: output projection ------------------------------------------
    out_vmem = _vmem_limit(_proj_vmem_estimate(proj_ts, D, n_head, d_k), is_v7)
    return _output_projection(attn, wo_t, bo, q.dtype, proj_ts, out_vmem)


# ----------------------------------------------------------------------------
# Pure-JAX reference (mirrors the PyTorch module) + tests
# ----------------------------------------------------------------------------

def _reference_mha(q, k, v, params, n_head, mask=None):
    B, S, D = q.shape
    d_k = D // n_head

    def lin(x, w, b):          # nn.Linear: x @ W.T + b
        return x @ w.T + b

    def split_heads(x):        # (B, S, D) -> (B, H, S, d_k)
        return x.reshape(B, S, n_head, d_k).transpose(0, 2, 1, 3)

    Q = split_heads(lin(q, params["wq"], params["bq"]))
    K = split_heads(lin(k, params["wk"], params["bk"]))
    V = split_heads(lin(v, params["wv"], params["bv"]))

    w = jnp.einsum("bhqd,bhkd->bhqk", Q, K) / math.sqrt(d_k)
    if mask is not None:
        w = jnp.where(mask.astype(bool)[None, None], -jnp.inf, w)
    w = jax.nn.softmax(w, axis=-1)
    out = jnp.einsum("bhqk,bhkd->bhqd", w, V)
    out = out.transpose(0, 2, 1, 3).reshape(B, S, D)
    return lin(out, params["wo"], params["bo"])


def _run_case(B, S, D, H, use_mask, key, tq=None, tk=None):
    keys = jax.random.split(key, 11)
    scale = 1.0 / math.sqrt(D)
    params = {
        "wq": jax.random.uniform(keys[0], (D, D), jnp.float32, -scale, scale),
        "bq": jax.random.uniform(keys[1], (D,), jnp.float32, -scale, scale),
        "wk": jax.random.uniform(keys[2], (D, D), jnp.float32, -scale, scale),
        "bk": jax.random.uniform(keys[3], (D,), jnp.float32, -scale, scale),
        "wv": jax.random.uniform(keys[4], (D, D), jnp.float32, -scale, scale),
        "bv": jax.random.uniform(keys[5], (D,), jnp.float32, -scale, scale),
        "wo": jax.random.uniform(keys[6], (D, D), jnp.float32, -scale, scale),
        "bo": jax.random.uniform(keys[7], (D,), jnp.float32, -scale, scale),
    }
    q = jax.random.normal(keys[8], (B, S, D), jnp.float32)
    k = jax.random.normal(keys[9], (B, S, D), jnp.float32)
    v = jax.random.normal(keys[10], (B, S, D), jnp.float32)

    mask = None
    if use_mask:
        # Causal-style mask: mask[i, j] == 1 => position blocked.
        mask = (jnp.arange(S)[:, None] < jnp.arange(S)[None, :]).astype(jnp.int32)

    out = jax.block_until_ready(
        multi_head_attention(q, k, v, params, H, mask=mask, tq=tq, tk=tk))
    ref = _reference_mha(q, k, v, params, H, mask=mask)
    assert out.shape == (B, S, D)
    assert out.dtype == q.dtype
    # bf16 MXU feeds, bf16 exp (v6e/v7x) and approx reciprocal => inference-grade
    # tolerance vs the pure-f32 reference.
    err = float(jnp.max(jnp.abs(out - ref)))
    assert jnp.allclose(out, ref, atol=3e-2, rtol=3e-2), (
        f"mismatch (S={S}, mask={use_mask}, tq={tq}, tk={tk}): max abs err {err}")


if __name__ == "__main__":
    key = jax.random.PRNGKey(0)
    # Small toy shape (single q/kv tile).
    _run_case(2, 8, 32, 4, True, key)
    _run_case(2, 8, 32, 4, False, key)
    # Longer sequence with forced 128-tiles to exercise the multi-kv-tile flash
    # path, online softmax, and masked-tile skipping (grid = (2, 2, 2)).
    _run_case(2, 256, 32, 4, True, key, tq=128, tk=128)
    # Generation-default tiles (256 on v6e/v7x, 128 on v5e/other).
    _run_case(2, 256, 32, 4, False, key)
    print("KERNEL_OK")
</pallas_src>

<mosaic_0001>
module attributes {stable_mosaic.version = 11 : i64} {
  func.func @_linear_heads_kernel(%arg0: i32, %arg1: i32, %arg2: memref<1x8x32xf32, #tpu.memory_space<vmem>>, %arg3: memref<32x32xbf16, #tpu.memory_space<vmem>>, %arg4: memref<1x32xf32, #tpu.memory_space<vmem>>, %arg5: memref<1x4x8x8xbf16, #tpu.memory_space<vmem>>) attributes {dimension_semantics = [#tpu.dimension_semantics<parallel>, #tpu.dimension_semantics<parallel>], iteration_bounds = array<i64: 2, 1>, scalar_prefetch = 0 : i64, scratch_operands = 0 : i64, tpu.core_type = #tpu.core_type<tc>, window_params = [{transform_indices = @transform_0, window_bounds = array<i64: 1, 8, 32>}, {pipeline_mode = #tpu.pipeline_mode<synchronous>, transform_indices = @transform_1, window_bounds = array<i64: 32, 32>}, {pipeline_mode = #tpu.pipeline_mode<synchronous>, transform_indices = @transform_2, window_bounds = array<i64: 1, 32>}, {transform_indices = @transform_3, window_bounds = array<i64: 1, 4, 8, 8>}]} {
    %c0 = arith.constant 0 : index
    %c0_0 = arith.constant 0 : index
    %c0_1 = arith.constant 0 : index
    %0 = vector.load %arg2[%c0, %c0_0, %c0_1] : memref<1x8x32xf32, #tpu.memory_space<vmem>>, vector<1x8x32xf32>
    %1 = vector.shape_cast %0 : vector<1x8x32xf32> to vector<8x32xf32>
    %2 = arith.truncf %1 : vector<8x32xf32> to vector<8x32xbf16>
    %c0_2 = arith.constant 0 : index
    %c0_3 = arith.constant 0 : index
    %3 = vector.load %arg3[%c0_2, %c0_3] : memref<32x32xbf16, #tpu.memory_space<vmem>>, vector<32x32xbf16>
    %cst = arith.constant dense<0.000000e+00> : vector<8x32xf32>
    %4 = tpu.matmul %2, %3, %cst {dimension_numbers = #tpu.dot_dimension_numbers<[1], [0], [0], [1], [0, 0, 1, 1], [], []>} : vector<8x32xbf16>, vector<32x32xbf16>, vector<8x32xf32> -> vector<8x32xf32>
    %c0_4 = arith.constant 0 : index
    %c0_5 = arith.constant 0 : index
    %5 = vector.load %arg4[%c0_4, %c0_5] : memref<1x32xf32, #tpu.memory_space<vmem>>, vector<1x32xf32>
    %6 = vector.broadcast %5 : vector<1x32xf32> to vector<8x32xf32>
    %7 = arith.addf %4, %6 : vector<8x32xf32>
    %cst_6 = arith.constant 0.353553385 : f32
    %8 = vector.broadcast %cst_6 : f32 to vector<8x32xf32>
    %9 = arith.mulf %7, %8 : vector<8x32xf32>
    %10 = vector.shape_cast %9 : vector<8x32xf32> to vector<8x4x8xf32>
    %11 = tpu.transpose %10, [1, 0, 2] : vector<8x4x8xf32> -> vector<4x8x8xf32>
    %12 = arith.truncf %11 : vector<4x8x8xf32> to vector<4x8x8xbf16>
    %c0_7 = arith.constant 0 : index
    %c0_8 = arith.constant 0 : index
    %c0_9 = arith.constant 0 : index
    %c0_10 = arith.constant 0 : index
    %13 = vector.load %arg5[%c0_7, %c0_8, %c0_9, %c0_10] : memref<1x4x8x8xbf16, #tpu.memory_space<vmem>>, vector<1x4x8x8xbf16>
    %14 = vector.shape_cast %13 : vector<1x4x8x8xbf16> to vector<4x8x8xbf16>
    %15 = vector.shape_cast %12 : vector<4x8x8xbf16> to vector<1x4x8x8xbf16>
    tpu.vector_store %arg5[%c0_7, %c0_8, %c0_9, %c0_10], %15 {strides = array<i32>} : memref<1x4x8x8xbf16, #tpu.memory_space<vmem>>, vector<1x4x8x8xbf16>,
    return
  }
  func.func @transform_0(%arg0: i32, %arg1: i32) -> (i32, i32, i32) {
    %c0_i32 = arith.constant 0 : i32
    %c0_i32_0 = arith.constant 0 : i32
    return %arg0, %arg1, %c0_i32 : i32, i32, i32
  }
  func.func @transform_1(%arg0: i32, %arg1: i32) -> (i32, i32) {
    %c0_i32 = arith.constant 0 : i32
    %c0_i32_0 = arith.constant 0 : i32
    %c0_i32_1 = arith.constant 0 : i32
    return %c0_i32, %c0_i32_0 : i32, i32
  }
  func.func @transform_2(%arg0: i32, %arg1: i32) -> (i32, i32) {
    %c0_i32 = arith.constant 0 : i32
    %c0_i32_0 = arith.constant 0 : i32
    %c0_i32_1 = arith.constant 0 : i32
    return %c0_i32, %c0_i32_0 : i32, i32
  }
  func.func @transform_3(%arg0: i32, %arg1: i32) -> (i32, i32, i32, i32) {
    %c0_i32 = arith.constant 0 : i32
    %c0_i32_0 = arith.constant 0 : i32
    %c0_i32_1 = arith.constant 0 : i32
    return %arg0, %c0_i32, %arg1, %c0_i32_0 : i32, i32, i32, i32
  }
}

</mosaic_0001>

<llo_original>
// kernel: tpu_custom_call.1
$region0: #{tpu_custom_call.1}
  #allocation0 [shape = 'u32[]', space=smem, size = 0x4, offset = 0x4, fixed_abs, tag = 'smem constant byte address 0x4 - core index']
  #allocation1 [shape = 'u32[72,128]{1,0:T(1,128)}', space=vmem, size = 0x9000, scoped, tag = 'internal scratch']
  %s0 = inlined_call_operand.hbm [shape: f32[2,8,32], index: 0, kind: input, shape index: {}]
  %s1 = inlined_call_operand.hbm [shape: bf16[32,32], index: 1, kind: input, shape index: {}]
  %s2 = inlined_call_operand.vmem [shape: f32[1,32], index: 2, kind: input, shape index: {}]
  %s3 = inlined_call_operand.hbm [shape: bf16[2,4,8,8], index: 3, kind: output, shape index: {}]
  %s4 = sld [smem:[#allocation0]]
  $region53: #{tpu_custom_call.1} parent=0
    _
  %s6 = ssub.s32 1, %s4
  %s7 = scalar_select 0, %s6, %s4
  $region1: #{tpu_custom_call.1} parent=0
    #allocation2 [shape = 'u8[8192]{0}', space=vmem, size = 0x2000, scoped, tag = 'input window, operand 0']
    #allocation3 [shape = 's32[2]{0}', space=sflag, size = 0x8, scoped, tag = 'scoped memory for tpu_custom_call.1']
    #allocation4 [shape = 's32[2]{0}', space=sflag, size = 0x8, scoped, tag = 'scoped memory for tpu_custom_call.1']
    #allocation5 [shape = 'u8[8192]{0}', space=vmem, size = 0x2000, scoped, tag = 'input window, operand 1, single buffered']
    #allocation6 [shape = 's32[1]{0}', space=sflag, size = 0x4, scoped, tag = 'scoped memory for tpu_custom_call.1']
    #allocation7 [shape = 'u8[16384]{0}', space=vmem, size = 0x4000, scoped, tag = 'output window, operand 0']
    %8 = vsyncpa [#allocation3], 0
    %s9 = scalar_lea.sflag [#allocation3], 1
    %10 = vsyncpa %s9, 0
    %11 = vsyncpa [#allocation6], 0
    %12 = vsyncpa [#allocation4], 0
    %s13 = scalar_lea.sflag [#allocation4], 1
    %14 = vsyncpa %s13, 0
    loop: start=0, step=1, limit=4
    $region2: #{tpu_custom_call.1} parent=1 // loop_pre_header
      _
    $region3: #{tpu_custom_call.1} parent=1 // loop_header
      %s16 = sphi 0, %s20
      %p17 = scmp.ge.s32.totalorder %s16, 4
      %s23 = sphi 0, %s35
      %s24 = sphi 0, %s31
      %s25 = sphi 0, %s23
      %s26 = sphi 0, %s24
      %s27 = sphi 0, %s25
      %s28 = sphi 0, %s26
      %s40 = sphi 0, %s42
      %s43 = sphi 0, %s40
      %s44 = sphi 0, %s43
      %s60 = sphi 0, %s44
      %s64 = sphi 0, %s64
      %s66 = sphi 0, %s64
      %s67 = sphi 0, %s66
      %s81 = sphi 0, %s67
      %s85 = sphi 0, %s85
      %s87 = sphi 0, %s85
      %s88 = sphi 0, %s87
      %s102 = sphi 0, %s88
      %s110 = sphi 0, %s112
      %s113 = sphi 0, %s110
      %s114 = sphi 0, %s113
      %s130 = sphi 0, %s114
    $region4: #{tpu_custom_call.1} parent=1 // loop_header_branch
      %19 = sbr.rel (%p17) target = $region8
    $region5: #{tpu_custom_call.1} parent=1 // loop_body
      %s21 = ssub.s32 %s16, 1
      %s22 = ssub.s32 %s16, 2
      %s29 = sadd.s32 1, %s24
      %p30 = scmp.ge.s32.totalorder %s29, 1
      %s31 = scalar_select %p30, 0, %s29
      %s32 = sadd.s32 1, %s23
      %s33 = scalar_select %p30, %s32, %s23
      %p34 = scmp.ge.s32.totalorder %s33, 2
      %s35 = scalar_select %p34, 0, %s33
      %s36 = ssub.s32 %s23, %s35
      %s37 = ssub.s32 %s24, %s31
      %s38 = sor.u32 %s36, %s37
      %p39 = scmp.eq.s32.totalorder %s38, 0
      %s41 = sadd.s32 %s40, 1
      %s42 = scalar_select %p39, %s40, %s41
      %p45 = pneg %p39
      %p46 = scmp.eq.s32.totalorder %s16, 1
      %p47 = por %p45, %p46
      %p48 = scmp.ne.s32.totalorder %s40, %s43
      %p49 = scmp.eq.s32.totalorder %s16, 0
      %p50 = por %p48, %p49
      %p51 = scmp.ne.s32.totalorder %s40, %s43
      %p52 = scmp.eq.s32.totalorder %s21, 1
      %p53 = por %p51, %p52
      %p54 = scmp.ne.s32.totalorder %s43, %s44
      %p55 = scmp.eq.s32.totalorder %s21, 0
      %p56 = por %p54, %p55
      %p57 = scmp.ne.s32.totalorder %s43, %s44
      %p58 = scmp.eq.s32.totalorder %s22, 1
      %p59 = por %p57, %p58
      %p61 = scmp.ne.s32.totalorder %s44, %s60
      %p62 = scmp.eq.s32.totalorder %s22, 0
      %p63 = por %p61, %p62
      %s65 = sadd.s32 %s64, 1
      %p68 = scmp.eq.s32.totalorder %s16, 1
      %p69 = scmp.ne.s32.totalorder %s64, %s66
      %p70 = scmp.eq.s32.totalorder %s16, 0
      %p71 = por %p69, %p70
      %p72 = scmp.ne.s32.totalorder %s64, %s66
      %p73 = scmp.eq.s32.totalorder %s21, 1
      %p74 = por %p72, %p73
      %p75 = scmp.ne.s32.totalorder %s66, %s67
      %p76 = scmp.eq.s32.totalorder %s21, 0
      %p77 = por %p75, %p76
      %p78 = scmp.ne.s32.totalorder %s66, %s67
      %p79 = scmp.eq.s32.totalorder %s22, 1
      %p80 = por %p78, %p79
      %p82 = scmp.ne.s32.totalorder %s67, %s81
      %p83 = scmp.eq.s32.totalorder %s22, 0
      %p84 = por %p82, %p83
      %s86 = sadd.s32 %s85, 1
      %p89 = scmp.eq.s32.totalorder %s16, 1
      %p90 = scmp.ne.s32.totalorder %s85, %s87
      %p91 = scmp.eq.s32.totalorder %s16, 0
      %p92 = por %p90, %p91
      %p93 = scmp.ne.s32.totalorder %s85, %s87
      %p94 = scmp.eq.s32.totalorder %s21, 1
      %p95 = por %p93, %p94
      %p96 = scmp.ne.s32.totalorder %s87, %s88
      %p97 = scmp.eq.s32.totalorder %s21, 0
      %p98 = por %p96, %p97
      %p99 = scmp.ne.s32.totalorder %s87, %s88
      %p100 = scmp.eq.s32.totalorder %s22, 1
      %p101 = por %p99, %p100
      %p103 = scmp.ne.s32.totalorder %s88, %s102
      %p104 = scmp.eq.s32.totalorder %s22, 0
      %p105 = por %p103, %p104
      %s106 = ssub.s32 %s23, %s35
      %s107 = ssub.s32 %s24, %s31
      %s108 = sor.u32 %s106, %s107
      %p109 = scmp.eq.s32.totalorder %s108, 0
      %s111 = sadd.s32 %s110, 1
      %s112 = scalar_select %p109, %s110, %s111
      %p115 = pneg %p109
      %p116 = scmp.eq.s32.totalorder %s16, 1
      %p117 = por %p115, %p116
      %p118 = scmp.ne.s32.totalorder %s110, %s113
      %p119 = scmp.eq.s32.totalorder %s16, 0
      %p120 = por %p118, %p119
      %p121 = scmp.ne.s32.totalorder %s110, %s113
      %p122 = scmp.eq.s32.totalorder %s21, 1
      %p123 = por %p121, %p122
      %p124 = scmp.ne.s32.totalorder %s113, %s114
      %p125 = scmp.eq.s32.totalorder %s21, 0
      %p126 = por %p124, %p125
      %p127 = scmp.ne.s32.totalorder %s113, %s114
      %p128 = scmp.eq.s32.totalorder %s22, 1
      %p129 = por %p127, %p128
      %p131 = scmp.ne.s32.totalorder %s114, %s130
      %p132 = scmp.eq.s32.totalorder %s22, 0
      %p133 = por %p131, %p132
      %p134 = scmp.le.s32.totalorder 1, %s16
      %p135 = scmp.lt.s32.totalorder %s16, 3
      %p136 = pnand %p134, %p135
      %p137 = pneg %p136
      // Predicated region
      $region9: #{tpu_custom_call.1} parent=5 // pred_check
        _
      $region10: #{tpu_custom_call.1} parent=5 // pred_check_branch
        %139 = sbr.rel (%p136) target = $region12
      $region11: #{tpu_custom_call.1} parent=5 // pred_region
        %s140 = ssub.s32 %s16, 1
        // Predicated region
        $region13: #{tpu_custom_call.1} parent=11 // pred_check
          %p141 = pneg %p77
        $region14: #{tpu_custom_call.1} parent=11 // pred_check_branch
          %143 = sbr.rel (%p141) target = $region16
        $region15: #{tpu_custom_call.1} parent=11 // pred_region
          %145 = vsyncadd [#allocation6], 0
          %s146 = sshll.u32 %s1, 4
          %s147 = int_to_ptr.hbm [resolvable:$true] %s146
          %s148 = sshll.u32 [#allocation5], 4
          %s149 = int_to_ptr.vmem [resolvable:$true] %s148
          %154 = dma.hbm_to_vmem [thread:$0]  %s147, 256, %s149, [#allocation6], 64, 64, 4
        $region16: #{tpu_custom_call.1} parent=11 // pred_fallthru
          _
        // Predicated region
        $region17: #{tpu_custom_call.1} parent=11 // pred_check
          %p155 = pneg %p98
        $region18: #{tpu_custom_call.1} parent=11 // pred_check_branch
          %157 = sbr.rel (%p155) target = $region20
        $region19: #{tpu_custom_call.1} parent=11 // pred_region
          _
        $region20: #{tpu_custom_call.1} parent=11 // pred_fallthru
          _
      $region12: #{tpu_custom_call.1} parent=5 // pred_fallthru
        _
      %p158 = scmp.lt.s32.totalorder %s16, 2
      // Predicated region
      $region21: #{tpu_custom_call.1} parent=5 // pred_check
        %p159 = pneg %p158
      $region22: #{tpu_custom_call.1} parent=5 // pred_check_branch
        %161 = sbr.rel (%p159) target = $region24
      $region23: #{tpu_custom_call.1} parent=5 // pred_region
        // Predicated region
        $region25: #{tpu_custom_call.1} parent=23 // pred_check
          %p162 = pneg %p50
        $region26: #{tpu_custom_call.1} parent=23 // pred_check_branch
          %164 = sbr.rel (%p162) target = $region28
        $region27: #{tpu_custom_call.1} parent=23 // pred_region
          %s165 = sand.u32 %s40, 1
          %s166 = scalar_lea.sflag [#allocation3], %s165
          %s167 = sand.u32 %s40, 1
          %s168 = smul.addr %s167, 8
          %s169 = scalar_lea.vmem [#allocation2], %s168
          %171 = vsyncadd %s166, 0
          %s172 = sadd.s32 %s24, %s23
          %s173 = smul.addr %s172, 8
          %s174 = scalar_lea.hbm %s0, %s173
          %s176 = sshll.u32 %s174, 4
          %s177 = int_to_ptr.hbm [resolvable:$true] %s176
          %s178 = sshll.u32 %s169, 4
          %s179 = int_to_ptr.vmem [resolvable:$true] %s178
          %181 = dma.hbm_to_vmem [thread:$0]  %s177, 128, %s179, %s166
        $region28: #{tpu_custom_call.1} parent=23 // pred_fallthru
          _
      $region24: #{tpu_custom_call.1} parent=5 // pred_fallthru
        _
      %p182 = scmp.le.s32.totalorder 1, %s16
      %p183 = scmp.lt.s32.totalorder %s16, 3
      %p184 = pnand %p182, %p183
      %p185 = pneg %p184
      // Predicated region
      $region29: #{tpu_custom_call.1} parent=5 // pred_check
        _
      $region30: #{tpu_custom_call.1} parent=5 // pred_check_branch
        %187 = sbr.rel (%p184) target = $region32
      $region31: #{tpu_custom_call.1} parent=5 // pred_region
        %s188 = ssub.s32 %s16, 1
        %s189 = sand.u32 %s43, 1
        %s190 = scalar_lea.sflag [#allocation3], %s189
        %s191 = sand.u32 %s43, 1
        %s192 = smul.addr %s191, 8
        %s193 = scalar_lea.vmem [#allocation2], %s192
        // Predicated region
        $region33: #{tpu_custom_call.1} parent=31 // pred_check
          %p194 = pneg %p56
        $region34: #{tpu_custom_call.1} parent=31 // pred_check_branch
          %196 = sbr.rel (%p194) target = $region36
        $region35: #{tpu_custom_call.1} parent=31 // pred_region
          %198 = dma.done %s190, 128
        $region36: #{tpu_custom_call.1} parent=31 // pred_fallthru
          _
        // Predicated region
        $region37: #{tpu_custom_call.1} parent=31 // pred_check
          %p199 = pneg %p77
        $region38: #{tpu_custom_call.1} parent=31 // pred_check_branch
          %201 = sbr.rel (%p199) target = $region40
        $region39: #{tpu_custom_call.1} parent=31 // pred_region
          %203 = dma.done [#allocation6], 256
        $region40: #{tpu_custom_call.1} parent=31 // pred_fallthru
          _
        %s204 = sand.u32 %s43, 1
        %s205 = scalar_lea.sflag [#allocation3], %s204
        %s206 = sand.u32 %s43, 1
        %s207 = smul.addr %s206, 8
        %s208 = scalar_lea.vmem [#allocation2], %s207
        %p209 = pneg %p56
        %p210 = pneg %p53
        %p211 = pneg %p77
        %p212 = pneg %p74
        %p213 = pneg %p98
        %p214 = pneg %p95
        %p215 = pneg %p126
        %p216 = pneg %p123
        %s217 = sand.u32 %s113, 1
        %s218 = scalar_lea.sflag [#allocation4], %s217
        %s219 = sand.u32 %s113, 1
        %s220 = smul.addr %s219, 16
        %s221 = scalar_lea.vmem [#allocation7], %s220
        %v223 = vld [vmem:[%s193] sm:$0xff]
        %v224 = vpack.c.bf16 %v223, %v223
        %v225 = vld [vmem:[#allocation5] sm:$0xf]
        %v226 = vld [vmem:[#allocation5 + $0x4] sm:$0xf]
        %v227 = vld [vmem:[#allocation5 + $0x8] sm:$0xf]
        %v228 = vld [vmem:[#allocation5 + $0xc] sm:$0xf]
        %v229 = vld [vmem:[%s2] sm:$0x1]
        %v231 = vperm.slane %v229, 0
        %v237 = vunpack.c.l.b16 %v225
        %v238 = vunpack.c.l.b16 %v226
        %v239 = vunpack.c.l.b16 %v227
        %v240 = vunpack.c.l.b16 %v228
        %v241 = vpack.c.b16 %v238, %v237
        %v242 = vpack.c.b16 %v240, %v239
        %vm245 = vcmask 261120
        %v247 = vsel %vm245, %v224, 0
        %249 = vmatpush.bf16.msra.mxu0 0
        %250 = vmatpush.bf16.msra.mxu0 0
        %251 = vmatpush.bf16.msra.mxu0 0
        %252 = vmatpush.bf16.msra.mxu0 0
        %253 = vmatpush.bf16.msra.mxu0 0
        %254 = vmatpush.bf16.msra.mxu0 0
        %255 = vmatpush.bf16.msra.mxu0 %v242
        %256 = vmatpush.bf16.msra.mxu0 %v241
        %257 = vmatmul.bf16.gmra.mxu0 %v247
        %v258 = vpop.f32.mrf.mxu0
        %v259 = vadd.f32 %v231, %v258
        %v260 = vpop.f32.mrf.mxu0
        %261 = vdwg.mxu0
        %v262 = vmul.f32 %v259, 0.35355338
        %264 = vrot.lane.b32.xlu0 %v262, 120
        %v265 = vpop.permute.xlu0 %264
        %267 = vrot.lane.b32.xlu0 %v262, 112
        %v268 = vpop.permute.xlu0 %267
        %270 = vrot.lane.b32.xlu0 %v262, 104
        %v271 = vpop.permute.xlu0 %270
        %v273 = vrot.slane %v268, 4
        %vm274 = vcmask 1047556
        %v275 = vsel %vm274, %v273, %v262
        %v276 = vrot.slane %v262, 4
        %v277 = vsel %vm274, %v268, %v276
        %v279 = vunpack.c.l.s4 1983009808
        %v280 = vunpack.c.0.s8 %v279
        %v281 = vperm.slane %v275, %v280
        %v283 = vunpack.c.l.s4 1983009808
        %v284 = vunpack.c.0.s8 %v283
        %v285 = vperm.slane %v277, %v284
        %v286 = vrot.slane %v271, 4
        %v287 = vsel %vm274, %v286, %v265
        %v288 = vrot.slane %v265, 4
        %v289 = vsel %vm274, %v271, %v288
        %v291 = vunpack.c.l.s4 1983009808
        %v292 = vunpack.c.0.s8 %v291
        %v293 = vperm.slane %v287, %v292
        %v295 = vunpack.c.l.s4 1983009808
        %v296 = vunpack.c.0.s8 %v295
        %v297 = vperm.slane %v289, %v296
        %v298 = vrot.slane %v293, 4
        %v299 = vsel %vm274, %v298, %v281
        %v300 = vrot.slane %v281, 4
        %v301 = vsel %vm274, %v293, %v300
        %v303 = vunpack.c.l.s4 1934713408
        %v304 = vunpack.c.0.s8 %v303
        %v305 = vperm.slane %v299, %v304
        %v307 = vunpack.c.l.s4 1934713408
        %v308 = vunpack.c.0.s8 %v307
        %v309 = vperm.slane %v301, %v308
        %v310 = vrot.slane %v297, 4
        %v311 = vsel %vm274, %v310, %v285
        %v312 = vrot.slane %v285, 4
        %v313 = vsel %vm274, %v297, %v312
        %v315 = vunpack.c.l.s4 1934713408
        %v316 = vunpack.c.0.s8 %v315
        %v317 = vperm.slane %v311, %v316
        %v319 = vunpack.c.l.s4 1934713408
        %v320 = vunpack.c.0.s8 %v319
        %v321 = vperm.slane %v313, %v320
        %v322 = vrot.slane %v305, 4
        %v323 = vsel %vm274, 0.0, %v322
        %v324 = vrot.slane %v309, 4
        %v325 = vsel %vm274, 0.0, %v324
        %v326 = vrot.slane %v317, 4
        %v327 = vsel %vm274, 0.0, %v326
        %v328 = vrot.slane %v321, 4
        %v329 = vsel %vm274, 0.0, %v328
        %v330 = vsel %vm274, %v324, %v305
        %v332 = vunpack.c.l.s4 1983009808
        %v333 = vunpack.c.0.s8 %v332
        %v334 = vperm.slane %v330, %v333
        %v335 = vrot.slane %v325, 4
        %v336 = vsel %vm274, %v335, %v323
        %v338 = vunpack.c.l.s4 1983009808
        %v339 = vunpack.c.0.s8 %v338
        %v340 = vperm.slane %v336, %v339
        %v341 = vsel %vm274, %v328, %v317
        %v343 = vunpack.c.l.s4 1983009808
        %v344 = vunpack.c.0.s8 %v343
        %v345 = vperm.slane %v341, %v344
        %v346 = vrot.slane %v329, 4
        %v347 = vsel %vm274, %v346, %v327
        %v349 = vunpack.c.l.s4 1983009808
        %v350 = vunpack.c.0.s8 %v349
        %v351 = vperm.slane %v347, %v350
        %v352 = vrot.slane %v340, 4
        %v353 = vsel %vm274, %v352, %v334
        %v354 = vrot.slane %v334, 4
        %v355 = vsel %vm274, %v340, %v354
        %v357 = vunpack.c.l.s4 1934713408
        %v358 = vunpack.c.0.s8 %v357
        %v359 = vperm.slane %v353, %v358
        %v361 = vunpack.c.l.s4 1934713408
        %v362 = vunpack.c.0.s8 %v361
        %v363 = vperm.slane %v355, %v362
        %v364 = vrot.slane %v351, 4
        %v365 = vsel %vm274, %v364, %v345
        %v366 = vrot.slane %v345, 4
        %v367 = vsel %vm274, %v351, %v366
        %v369 = vunpack.c.l.s4 1934713408
        %v370 = vunpack.c.0.s8 %v369
        %v371 = vperm.slane %v365, %v370
        %v373 = vunpack.c.l.s4 1934713408
        %v374 = vunpack.c.0.s8 %v373
        %v375 = vperm.slane %v367, %v374
        %v376 = vrot.slane %v371, 4
        %v377 = vsel %vm274, %v376, %v359
        %v378 = vrot.slane %v359, 4
        %v379 = vsel %vm274, %v371, %v378
        %v380 = vrot.slane %v375, 4
        %v381 = vsel %vm274, %v380, %v363
        %v382 = vrot.slane %v363, 4
        %v383 = vsel %vm274, %v375, %v382
        %v384 = vpack.c.bf16 %v377, %v377
        %v385 = vpack.c.bf16 %v379, %v379
        %v386 = vpack.c.bf16 %v381, %v381
        %v387 = vpack.c.bf16 %v383, %v383
        %vm388 = vcmask 60416
        %389 = vst.msk [vmem:[%s221] sm:$0xf] %vm388, %v384
        %390 = vst.msk [vmem:[%s221 + $0x4] sm:$0xf] %vm388, %v385
        %391 = vst.msk [vmem:[%s221 + $0x8] sm:$0xf] %vm388, %v386
        %392 = vst.msk [vmem:[%s221 + $0xc] sm:$0xf] %vm388, %v387
        %s393 = sand.u32 %s113, 1
        %s394 = scalar_lea.sflag [#allocation4], %s393
        %s395 = sand.u32 %s113, 1
        %s396 = smul.addr %s395, 16
        %s397 = scalar_lea.vmem [#allocation7], %s396
        // Predicated region
        $region41: #{tpu_custom_call.1} parent=31 // pred_check
          %p398 = pneg %p123
        $region42: #{tpu_custom_call.1} parent=31 // pred_check_branch
          %400 = sbr.rel (%p398) target = $region44
        $region43: #{tpu_custom_call.1} parent=31 // pred_region
          %402 = vsyncadd %s394, 0
          %s403 = smul.addr %s25, 4
          %s404 = sadd.s32 %s26, %s403
          %s405 = smul.addr %s404, 4
          %s406 = scalar_lea.hbm %s3, %s405
          %s407 = sshll.u32 %s397, 4
          %s408 = int_to_ptr.vmem [resolvable:$true] %s407
          %s409 = sshll.u32 %s406, 4
          %s410 = int_to_ptr.hbm [resolvable:$true] %s409
          %415 = dma.vmem_to_hbm [thread:$0]  %s408, 256, %s410, %s394, 64, 64, 4
        $region44: #{tpu_custom_call.1} parent=31 // pred_fallthru
          _
      $region32: #{tpu_custom_call.1} parent=5 // pred_fallthru
        _
      %p416 = scmp.le.s32.totalorder 2, %s16
      // Predicated region
      $region45: #{tpu_custom_call.1} parent=5 // pred_check
        %p417 = pneg %p416
      $region46: #{tpu_custom_call.1} parent=5 // pred_check_branch
        %419 = sbr.rel (%p417) target = $region48
      $region47: #{tpu_custom_call.1} parent=5 // pred_region
        %s420 = ssub.s32 %s16, 2
        // Predicated region
        $region49: #{tpu_custom_call.1} parent=47 // pred_check
          %p421 = pneg %p129
        $region50: #{tpu_custom_call.1} parent=47 // pred_check_branch
          %423 = sbr.rel (%p421) target = $region52
        $region51: #{tpu_custom_call.1} parent=47 // pred_region
          %s424 = sand.u32 %s114, 1
          %s425 = scalar_lea.sflag [#allocation4], %s424
          %s426 = sand.u32 %s114, 1
          %s427 = smul.addr %s426, 16
          %s428 = scalar_lea.vmem [#allocation7], %s427
          %430 = dma.done %s425, 256
        $region52: #{tpu_custom_call.1} parent=47 // pred_fallthru
          _
      $region48: #{tpu_custom_call.1} parent=5 // pred_fallthru
        _
    $region6: #{tpu_custom_call.1} parent=1 // loop_footer
      %s20 = sadd.s32 1, %s16
    $region7: #{tpu_custom_call.1} parent=1 // loop_footer_branch
      %15 = sbr.rel target = $region3
    $region8: #{tpu_custom_call.1} parent=1 // loop_exit
      _
    %431 = vsyncpa [#allocation3], 1
    %s432 = scalar_lea.sflag [#allocation3], 1
    %433 = vsyncpa %s432, 1
    %434 = vsyncpa [#allocation6], 1
    %435 = vsyncpa [#allocation4], 1
    %s436 = scalar_lea.sflag [#allocation4], 1
    %437 = vsyncpa %s436, 1

</llo_original>
